<compile_context>
chip_gen: v6e
topology: v6e:2x2x1
jax: 0.10.0
libtpu: 0.0.40
codegen_flags: <defaults>
</compile_context>

<pallas_src>
import jax
import jax.numpy as jnp
from jax.experimental import pallas as pl
from jax.experimental.pallas import tpu as pltpu


# --------------------------------------------------------------------------
# Kernel: one batch tile of the fused two-head critic MLP.
# --------------------------------------------------------------------------
def _critic_kernel(x_ref, u_ref,                    # (tile_b, Ds) f32, (tile_b, Da) f32
                   w1x_ref, w1u_ref, b1_ref,        # (Ds,2H) bf16, (Da,2H) bf16, (1,2H) f32
                   w2_ref, b2_ref,                  # (2H,2H) bf16, (1,2H) f32
                   w3t_ref, b3t_ref,                # (2,2H)  bf16, (2,1)  f32
                   qt_ref):                         # (2, tile_b) f32
    # layer 1: row-split weight -> two accumulating MXU matmuls (no xu concat)
    h = jnp.dot(x_ref[...].astype(jnp.bfloat16), w1x_ref[...],
                preferred_element_type=jnp.float32)
    h = h + jnp.dot(u_ref[...].astype(jnp.bfloat16), w1u_ref[...],
                    preferred_element_type=jnp.float32)
    h = jnp.maximum(h + b1_ref[...], 0.0).astype(jnp.bfloat16)

    # layer 2: block-diagonal -> the two heads stay independent
    h = jnp.dot(h, w2_ref[...], preferred_element_type=jnp.float32) + b2_ref[...]
    h = jnp.maximum(h, 0.0).astype(jnp.bfloat16)

    # layer 3, computed transposed on the MXU: (2, 2H) @ (tile_b, 2H)^T
    # -> lane-dense (2, tile_b) result (row 0 = q1, row 1 = q2).
    qt = jax.lax.dot_general(
        w3t_ref[...], h,
        dimension_numbers=(((1,), (1,)), ((), ())),
        preferred_element_type=jnp.float32)
    qt_ref[...] = (qt + b3t_ref[...]).astype(qt_ref.dtype)


# --------------------------------------------------------------------------
# Parameter init / packing.
# --------------------------------------------------------------------------
def init_critic_params(key, critic_input_dim, n_hidden):
    """nn.Linear-style init: U(-1/sqrt(fan_in), +1/sqrt(fan_in)).

    Weights stored (in_features, out_features); biases (1, out_features).
    """
    dims = [
        ("w1", "b1", critic_input_dim, n_hidden),
        ("w2", "b2", n_hidden, n_hidden),
        ("w3", "b3", n_hidden, 1),
        ("w4", "b4", critic_input_dim, n_hidden),
        ("w5", "b5", n_hidden, n_hidden),
        ("w6", "b6", n_hidden, 1),
    ]
    params = {}
    keys = jax.random.split(key, 2 * len(dims))
    for idx, (wn, bn, fan_in, fan_out) in enumerate(dims):
        bound = 1.0 / (fan_in ** 0.5)
        params[wn] = jax.random.uniform(
            keys[2 * idx], (fan_in, fan_out), jnp.float32, -bound, bound)
        params[bn] = jax.random.uniform(
            keys[2 * idx + 1], (1, fan_out), jnp.float32, -bound, bound)
    return params


def _block_diag(a, b):
    za = jnp.zeros((a.shape[0], b.shape[1]), a.dtype)
    zb = jnp.zeros((b.shape[0], a.shape[1]), b.dtype)
    top = jnp.concatenate([a, za], axis=1)
    bot = jnp.concatenate([zb, b], axis=1)
    return jnp.concatenate([top, bot], axis=0)


def pack_critic_params(params, state_dim):
    """Fuse the two Q-heads: bf16 weights, f32 biases.

    layer 1: (D_in, 2H), row-split into state / action blocks (x and u are
             fed to the kernel separately -> no wrapper-side concat pass).
    layer 2: block-diagonal (2H, 2H)   -- heads stay independent.
    layer 3: block-diagonal, stored transposed as (2, 2H) so the kernel can
             emit the lane-dense (2, tile_b) output directly from the MXU.

    # TODO(synk): if n_hidden is scaled to >=128 (v5e) / >=256 (v6e/v7x), the
    # block-diagonal layer 2 doubles MXU work -- switch to per-head matmuls.
    """
    w1f = jnp.concatenate([params["w1"], params["w4"]], axis=1)   # (D_in, 2H)
    b1f = jnp.concatenate([params["b1"], params["b4"]], axis=1)   # (1, 2H)
    w2f = _block_diag(params["w2"], params["w5"])                 # (2H, 2H)
    b2f = jnp.concatenate([params["b2"], params["b5"]], axis=1)   # (1, 2H)
    w3f = _block_diag(params["w3"], params["w6"])                 # (2H, 2)
    b3f = jnp.concatenate([params["b3"], params["b6"]], axis=0)   # (2, 1)
    return {
        "w1x": w1f[:state_dim].astype(jnp.bfloat16),
        "w1u": w1f[state_dim:].astype(jnp.bfloat16),
        "b1": b1f.astype(jnp.float32),
        "w2": w2f.astype(jnp.bfloat16),
        "b2": b2f.astype(jnp.float32),
        "w3t": w3f.T.astype(jnp.bfloat16),                        # (2, 2H)
        "b3t": b3f.astype(jnp.float32),                           # (2, 1)
    }


# --------------------------------------------------------------------------
# Wrapper.
# --------------------------------------------------------------------------
def _round_up(x, m):
    return ((x + m - 1) // m) * m


def _choose_tile_b(batch):
    """Fewest/largest tiles: one grid step unless the batch is large.

    The kernel is per-grid-step-overhead / DMA-latency bound (weights ~10 KB
    bf16, activations tiny), so splitting only pays once each step carries a
    few hundred rows.  When splitting, tile_b = 512 (multiple of 128) keeps
    every block -- including the lane-dense (2, tile_b) output -- aligned.
    """
    if batch <= 1024:
        return batch       # single tile; blocks == full array dims
    return 512


@jax.jit
def critic_forward(x, u, fused_params):
    """TD3 Critic forward.  Returns (q1, q2), each (B, 1) float32."""
    B, state_dim = x.shape
    action_dim = u.shape[1]
    H2 = fused_params["w1x"].shape[1]                 # 2 * n_hidden

    tile_b = _choose_tile_b(B)
    B_pad = _round_up(B, tile_b)
    if B_pad != B:                                    # only when B > 1024
        x = jnp.pad(x, ((0, B_pad - B), (0, 0)))
        u = jnp.pad(u, ((0, B_pad - B), (0, 0)))

    grid = (B_pad // tile_b,)

    def resident(shape):                              # grid-invariant, VMEM-resident
        return pl.BlockSpec(shape, lambda i: (0, 0))

    in_specs = [
        pl.BlockSpec((tile_b, state_dim), lambda i: (i, 0)),    # x
        pl.BlockSpec((tile_b, action_dim), lambda i: (i, 0)),   # u
        resident((state_dim, H2)),                              # w1x
        resident((action_dim, H2)),                             # w1u
        resident((1, H2)),                                      # b1
        resident((H2, H2)),                                     # w2
        resident((1, H2)),                                      # b2
        resident((2, H2)),                                      # w3t
        resident((2, 1)),                                       # b3t
    ]
    out_specs = pl.BlockSpec((2, tile_b), lambda i: (0, i))     # lane-dense output

    qt = pl.pallas_call(
        _critic_kernel,
        out_shape=jax.ShapeDtypeStruct((2, B_pad), jnp.float32),
        grid=grid,
        in_specs=in_specs,
        out_specs=out_specs,
        compiler_params=pltpu.CompilerParams(
            dimension_semantics=("parallel",)),
    )(x, u,
      fused_params["w1x"], fused_params["w1u"], fused_params["b1"],
      fused_params["w2"], fused_params["b2"],
      fused_params["w3t"], fused_params["b3t"])

    q1 = qt[0, :B][:, None]
    q2 = qt[1, :B][:, None]
    return q1, q2


# --------------------------------------------------------------------------
# Pure-JAX f32 reference (unfused) for the correctness check.
# --------------------------------------------------------------------------
def _reference_forward(x, u, params):
    xu = jnp.concatenate([x, u], axis=1)
    h = jax.nn.relu(xu @ params["w1"] + params["b1"])
    h = jax.nn.relu(h @ params["w2"] + params["b2"])
    q1 = h @ params["w3"] + params["b3"]
    g = jax.nn.relu(xu @ params["w4"] + params["b4"])
    g = jax.nn.relu(g @ params["w5"] + params["b5"])
    q2 = g @ params["w6"] + params["b6"]
    return q1, q2


if __name__ == "__main__":
    key = jax.random.PRNGKey(0)
    kx, ku, kp = jax.random.split(key, 3)

    batch = 64
    state_dim = 12
    action_dim = 4
    critic_input_dim = state_dim + action_dim   # 16
    n_hidden = 32

    x = jax.random.normal(kx, (batch, state_dim), jnp.float32)
    u = jax.random.normal(ku, (batch, action_dim), jnp.float32)
    params = init_critic_params(kp, critic_input_dim, n_hidden)
    fused = pack_critic_params(params, state_dim)

    q1, q2 = critic_forward(x, u, fused)
    jax.block_until_ready((q1, q2))

    # sanity check against the f32 pure-JAX reference
    # (kernel uses bf16 MXU inputs with f32 accumulation -> loose tolerance)
    r1, r2 = _reference_forward(x, u, params)
    assert q1.shape == (batch, 1) and q2.shape == (batch, 1)
    assert jnp.allclose(q1, r1, atol=5e-2, rtol=5e-2), "Q1 mismatch vs reference"
    assert jnp.allclose(q2, r2, atol=5e-2, rtol=5e-2), "Q2 mismatch vs reference"

    print("KERNEL_OK")
</pallas_src>

<mosaic_0001>
module attributes {stable_mosaic.version = 11 : i64} {
  func.func @_critic_kernel(%arg0: i32, %arg1: memref<64x12xf32, #tpu.memory_space<vmem>>, %arg2: memref<64x4xf32, #tpu.memory_space<vmem>>, %arg3: memref<12x64xbf16, #tpu.memory_space<vmem>>, %arg4: memref<4x64xbf16, #tpu.memory_space<vmem>>, %arg5: memref<1x64xf32, #tpu.memory_space<vmem>>, %arg6: memref<64x64xbf16, #tpu.memory_space<vmem>>, %arg7: memref<1x64xf32, #tpu.memory_space<vmem>>, %arg8: memref<2x64xbf16, #tpu.memory_space<vmem>>, %arg9: memref<2x1xf32, #tpu.memory_space<vmem>>, %arg10: memref<2x64xf32, #tpu.memory_space<vmem>>) attributes {dimension_semantics = [#tpu.dimension_semantics<parallel>], iteration_bounds = array<i64: 1>, scalar_prefetch = 0 : i64, scratch_operands = 0 : i64, tpu.core_type = #tpu.core_type<tc>, window_params = [{transform_indices = @transform_0, window_bounds = array<i64: 64, 12>}, {transform_indices = @transform_1, window_bounds = array<i64: 64, 4>}, {pipeline_mode = #tpu.pipeline_mode<synchronous>, transform_indices = @transform_2, window_bounds = array<i64: 12, 64>}, {pipeline_mode = #tpu.pipeline_mode<synchronous>, transform_indices = @transform_3, window_bounds = array<i64: 4, 64>}, {pipeline_mode = #tpu.pipeline_mode<synchronous>, transform_indices = @transform_4, window_bounds = array<i64: 1, 64>}, {pipeline_mode = #tpu.pipeline_mode<synchronous>, transform_indices = @transform_5, window_bounds = array<i64: 64, 64>}, {pipeline_mode = #tpu.pipeline_mode<synchronous>, transform_indices = @transform_6, window_bounds = array<i64: 1, 64>}, {pipeline_mode = #tpu.pipeline_mode<synchronous>, transform_indices = @transform_7, window_bounds = array<i64: 2, 64>}, {pipeline_mode = #tpu.pipeline_mode<synchronous>, transform_indices = @transform_8, window_bounds = array<i64: 2, 1>}, {transform_indices = @transform_9, window_bounds = array<i64: 2, 64>}]} {
    %c0 = arith.constant 0 : index
    %c0_0 = arith.constant 0 : index
    %0 = vector.load %arg1[%c0, %c0_0] : memref<64x12xf32, #tpu.memory_space<vmem>>, vector<64x12xf32>
    %1 = arith.truncf %0 : vector<64x12xf32> to vector<64x12xbf16>
    %c0_1 = arith.constant 0 : index
    %c0_2 = arith.constant 0 : index
    %2 = vector.load %arg3[%c0_1, %c0_2] : memref<12x64xbf16, #tpu.memory_space<vmem>>, vector<12x64xbf16>
    %cst = arith.constant dense<0.000000e+00> : vector<64x64xf32>
    %3 = tpu.matmul %1, %2, %cst {dimension_numbers = #tpu.dot_dimension_numbers<[1], [0], [0], [1], [0, 0, 1, 1], [], []>} : vector<64x12xbf16>, vector<12x64xbf16>, vector<64x64xf32> -> vector<64x64xf32>
    %c0_3 = arith.constant 0 : index
    %c0_4 = arith.constant 0 : index
    %4 = vector.load %arg2[%c0_3, %c0_4] : memref<64x4xf32, #tpu.memory_space<vmem>>, vector<64x4xf32>
    %5 = arith.truncf %4 : vector<64x4xf32> to vector<64x4xbf16>
    %c0_5 = arith.constant 0 : index
    %c0_6 = arith.constant 0 : index
    %6 = vector.load %arg4[%c0_5, %c0_6] : memref<4x64xbf16, #tpu.memory_space<vmem>>, vector<4x64xbf16>
    %cst_7 = arith.constant dense<0.000000e+00> : vector<64x64xf32>
    %7 = tpu.matmul %5, %6, %cst_7 {dimension_numbers = #tpu.dot_dimension_numbers<[1], [0], [0], [1], [0, 0, 1, 1], [], []>} : vector<64x4xbf16>, vector<4x64xbf16>, vector<64x64xf32> -> vector<64x64xf32>
    %8 = arith.addf %3, %7 : vector<64x64xf32>
    %c0_8 = arith.constant 0 : index
    %c0_9 = arith.constant 0 : index
    %9 = vector.load %arg5[%c0_8, %c0_9] : memref<1x64xf32, #tpu.memory_space<vmem>>, vector<1x64xf32>
    %10 = vector.broadcast %9 : vector<1x64xf32> to vector<64x64xf32>
    %11 = arith.addf %8, %10 : vector<64x64xf32>
    %cst_10 = arith.constant 0.000000e+00 : f32
    %12 = vector.broadcast %cst_10 : f32 to vector<64x64xf32>
    %13 = arith.maximumf %11, %12 : vector<64x64xf32>
    %14 = arith.truncf %13 : vector<64x64xf32> to vector<64x64xbf16>
    %c0_11 = arith.constant 0 : index
    %c0_12 = arith.constant 0 : index
    %15 = vector.load %arg6[%c0_11, %c0_12] : memref<64x64xbf16, #tpu.memory_space<vmem>>, vector<64x64xbf16>
    %cst_13 = arith.constant dense<0.000000e+00> : vector<64x64xf32>
    %16 = tpu.matmul %14, %15, %cst_13 {dimension_numbers = #tpu.dot_dimension_numbers<[1], [0], [0], [1], [0, 0, 1, 1], [], []>} : vector<64x64xbf16>, vector<64x64xbf16>, vector<64x64xf32> -> vector<64x64xf32>
    %c0_14 = arith.constant 0 : index
    %c0_15 = arith.constant 0 : index
    %17 = vector.load %arg7[%c0_14, %c0_15] : memref<1x64xf32, #tpu.memory_space<vmem>>, vector<1x64xf32>
    %18 = vector.broadcast %17 : vector<1x64xf32> to vector<64x64xf32>
    %19 = arith.addf %16, %18 : vector<64x64xf32>
    %cst_16 = arith.constant 0.000000e+00 : f32
    %20 = vector.broadcast %cst_16 : f32 to vector<64x64xf32>
    %21 = arith.maximumf %19, %20 : vector<64x64xf32>
    %22 = arith.truncf %21 : vector<64x64xf32> to vector<64x64xbf16>
    %c0_17 = arith.constant 0 : index
    %c0_18 = arith.constant 0 : index
    %23 = vector.load %arg8[%c0_17, %c0_18] : memref<2x64xbf16, #tpu.memory_space<vmem>>, vector<2x64xbf16>
    %cst_19 = arith.constant dense<0.000000e+00> : vector<2x64xf32>
    %24 = tpu.matmul %23, %22, %cst_19 {dimension_numbers = #tpu.dot_dimension_numbers<[1], [1], [0], [0], [0, 0, 1, 0], [], []>} : vector<2x64xbf16>, vector<64x64xbf16>, vector<2x64xf32> -> vector<2x64xf32>
    %c0_20 = arith.constant 0 : index
    %c0_21 = arith.constant 0 : index
    %25 = vector.load %arg9[%c0_20, %c0_21] : memref<2x1xf32, #tpu.memory_space<vmem>>, vector<2x1xf32>
    %26 = vector.broadcast %25 : vector<2x1xf32> to vector<2x64xf32>
    %27 = arith.addf %24, %26 : vector<2x64xf32>
    %c0_22 = arith.constant 0 : index
    %c0_23 = arith.constant 0 : index
    %28 = vector.load %arg10[%c0_22, %c0_23] : memref<2x64xf32, #tpu.memory_space<vmem>>, vector<2x64xf32>
    tpu.vector_store %arg10[%c0_22, %c0_23], %27 {strides = array<i32>} : memref<2x64xf32, #tpu.memory_space<vmem>>, vector<2x64xf32>,
    return
  }
  func.func @transform_0(%arg0: i32) -> (i32, i32) {
    %c0_i32 = arith.constant 0 : i32
    %c0_i32_0 = arith.constant 0 : i32
    return %arg0, %c0_i32 : i32, i32
  }
  func.func @transform_1(%arg0: i32) -> (i32, i32) {
    %c0_i32 = arith.constant 0 : i32
    %c0_i32_0 = arith.constant 0 : i32
    return %arg0, %c0_i32 : i32, i32
  }
  func.func @transform_2(%arg0: i32) -> (i32, i32) {
    %c0_i32 = arith.constant 0 : i32
    %c0_i32_0 = arith.constant 0 : i32
    %c0_i32_1 = arith.constant 0 : i32
    return %c0_i32, %c0_i32_0 : i32, i32
  }
  func.func @transform_3(%arg0: i32) -> (i32, i32) {
    %c0_i32 = arith.constant 0 : i32
    %c0_i32_0 = arith.constant 0 : i32
    %c0_i32_1 = arith.constant 0 : i32
    return %c0_i32, %c0_i32_0 : i32, i32
  }
  func.func @transform_4(%arg0: i32) -> (i32, i32) {
    %c0_i32 = arith.constant 0 : i32
    %c0_i32_0 = arith.constant 0 : i32
    %c0_i32_1 = arith.constant 0 : i32
    return %c0_i32, %c0_i32_0 : i32, i32
  }
  func.func @transform_5(%arg0: i32) -> (i32, i32) {
    %c0_i32 = arith.constant 0 : i32
    %c0_i32_0 = arith.constant 0 : i32
    %c0_i32_1 = arith.constant 0 : i32
    return %c0_i32, %c0_i32_0 : i32, i32
  }
  func.func @transform_6(%arg0: i32) -> (i32, i32) {
    %c0_i32 = arith.constant 0 : i32
    %c0_i32_0 = arith.constant 0 : i32
    %c0_i32_1 = arith.constant 0 : i32
    return %c0_i32, %c0_i32_0 : i32, i32
  }
  func.func @transform_7(%arg0: i32) -> (i32, i32) {
    %c0_i32 = arith.constant 0 : i32
    %c0_i32_0 = arith.constant 0 : i32
    %c0_i32_1 = arith.constant 0 : i32
    return %c0_i32, %c0_i32_0 : i32, i32
  }
  func.func @transform_8(%arg0: i32) -> (i32, i32) {
    %c0_i32 = arith.constant 0 : i32
    %c0_i32_0 = arith.constant 0 : i32
    %c0_i32_1 = arith.constant 0 : i32
    return %c0_i32, %c0_i32_0 : i32, i32
  }
  func.func @transform_9(%arg0: i32) -> (i32, i32) {
    %c0_i32 = arith.constant 0 : i32
    %c0_i32_0 = arith.constant 0 : i32
    return %c0_i32, %arg0 : i32, i32
  }
}

</mosaic_0001>

<llo_original>
// kernel: critic_forward.1
$region0: #{critic_forward.1}
  #allocation0 [shape = 'u32[]', space=smem, size = 0x4, offset = 0x4, fixed_abs, tag = 'smem constant byte address 0x4 - core index']
  #allocation1 [shape = 'u32[144,128]{1,0:T(1,128)}', space=vmem, size = 0x12000, scoped, tag = 'internal scratch']
  %s0 = inlined_call_operand.vmem [shape: f32[64,12], index: 0, kind: input, shape index: {}]
  %s1 = inlined_call_operand.vmem [shape: f32[64,4], index: 1, kind: input, shape index: {}]
  %s2 = inlined_call_operand.vmem [shape: bf16[12,64], index: 2, kind: input, shape index: {}]
  %s3 = inlined_call_operand.vmem [shape: bf16[4,64], index: 3, kind: input, shape index: {}]
  %s4 = inlined_call_operand.vmem [shape: f32[1,64], index: 4, kind: input, shape index: {}]
  %s5 = inlined_call_operand.vmem [shape: bf16[64,64], index: 5, kind: input, shape index: {}]
  %s6 = inlined_call_operand.vmem [shape: f32[1,64], index: 6, kind: input, shape index: {}]
  %s7 = inlined_call_operand.vmem [shape: bf16[2,64], index: 7, kind: input, shape index: {}]
  %s8 = inlined_call_operand.vmem [shape: f32[2,1], index: 8, kind: input, shape index: {}]
  %s9 = inlined_call_operand.vmem [shape: f32[2,64], index: 9, kind: output, shape index: {}]
  %s10 = sld [smem:[#allocation0]]
  $region46: #{critic_forward.1} parent=0
    _
  %s12 = ssub.s32 1, %s10
  %s13 = scalar_select 0, %s12, %s10
  // Predicated region
  $region2: #{critic_forward.1} parent=0 // pred_check
    _
  $region3: #{critic_forward.1} parent=0 // pred_check_branch
    %15 = sbr.rel (0) target = $region5
  $region4: #{critic_forward.1} parent=0 // pred_region
    _
  $region5: #{critic_forward.1} parent=0 // pred_fallthru
    _
  // Predicated region
  $region6: #{critic_forward.1} parent=0 // pred_check
    _
  $region7: #{critic_forward.1} parent=0 // pred_check_branch
    %17 = sbr.rel (0) target = $region9
  $region8: #{critic_forward.1} parent=0 // pred_region
    _
  $region9: #{critic_forward.1} parent=0 // pred_fallthru
    _
  // Predicated region
  $region10: #{critic_forward.1} parent=0 // pred_check
    _
  $region11: #{critic_forward.1} parent=0 // pred_check_branch
    %19 = sbr.rel (0) target = $region13
  $region12: #{critic_forward.1} parent=0 // pred_region
    _
  $region13: #{critic_forward.1} parent=0 // pred_fallthru
    _
  // Predicated region
  $region14: #{critic_forward.1} parent=0 // pred_check
    _
  $region15: #{critic_forward.1} parent=0 // pred_check_branch
    %21 = sbr.rel (0) target = $region17
  $region16: #{critic_forward.1} parent=0 // pred_region
    _
  $region17: #{critic_forward.1} parent=0 // pred_fallthru
    _
  // Predicated region
  $region18: #{critic_forward.1} parent=0 // pred_check
    _
  $region19: #{critic_forward.1} parent=0 // pred_check_branch
    %23 = sbr.rel (0) target = $region21
  $region20: #{critic_forward.1} parent=0 // pred_region
    _
  $region21: #{critic_forward.1} parent=0 // pred_fallthru
    _
  // Predicated region
  $region22: #{critic_forward.1} parent=0 // pred_check
    _
  $region23: #{critic_forward.1} parent=0 // pred_check_branch
    %25 = sbr.rel (0) target = $region25
  $region24: #{critic_forward.1} parent=0 // pred_region
    _
  $region25: #{critic_forward.1} parent=0 // pred_fallthru
    _
  // Predicated region
  $region26: #{critic_forward.1} parent=0 // pred_check
    _
  $region27: #{critic_forward.1} parent=0 // pred_check_branch
    %27 = sbr.rel (0) target = $region29
  $region28: #{critic_forward.1} parent=0 // pred_region
    _
  $region29: #{critic_forward.1} parent=0 // pred_fallthru
    _
  // Predicated region
  $region30: #{critic_forward.1} parent=0 // pred_check
    _
  $region31: #{critic_forward.1} parent=0 // pred_check_branch
    %29 = sbr.rel (0) target = $region33
  $region32: #{critic_forward.1} parent=0 // pred_region
    _
  $region33: #{critic_forward.1} parent=0 // pred_fallthru
    _
  // Predicated region
  $region34: #{critic_forward.1} parent=0 // pred_check
    _
  $region35: #{critic_forward.1} parent=0 // pred_check_branch
    %31 = sbr.rel (0) target = $region37
  $region36: #{critic_forward.1} parent=0 // pred_region
    _
  $region37: #{critic_forward.1} parent=0 // pred_fallthru
    _
  %v33 = vld [vmem:[%s0] sm:$0xff]
  %v34 = vld [vmem:[%s0 + $0x8] sm:$0xff]
  %v35 = vld [vmem:[%s0 + $0x10] sm:$0xff]
  %v36 = vld [vmem:[%s0 + $0x18] sm:$0xff]
  %v37 = vld [vmem:[%s0 + $0x20] sm:$0xff]
  %v38 = vld [vmem:[%s0 + $0x28] sm:$0xff]
  %v39 = vld [vmem:[%s0 + $0x30] sm:$0xff]
  %v40 = vld [vmem:[%s0 + $0x38] sm:$0xff]
  %v41 = vpack.c.bf16 %v34, %v33
  %v42 = vpack.c.bf16 %v36, %v35
  %v43 = vpack.c.bf16 %v38, %v37
  %v44 = vpack.c.bf16 %v40, %v39
  %v45 = vld [vmem:[%s2] sm:$0xf]
  %v46 = vld [vmem:[%s2 + $0x4] sm:$0x3]
  %v47 = vld [vmem:[%s1] sm:$0xff]
  %v48 = vld [vmem:[%s1 + $0x8] sm:$0xff]
  %v49 = vld [vmem:[%s1 + $0x10] sm:$0xff]
  %v50 = vld [vmem:[%s1 + $0x18] sm:$0xff]
  %v51 = vld [vmem:[%s1 + $0x20] sm:$0xff]
  %v52 = vld [vmem:[%s1 + $0x28] sm:$0xff]
  %v53 = vld [vmem:[%s1 + $0x30] sm:$0xff]
  %v54 = vld [vmem:[%s1 + $0x38] sm:$0xff]
  %v55 = vpack.c.bf16 %v48, %v47
  %v56 = vpack.c.bf16 %v50, %v49
  %v57 = vpack.c.bf16 %v52, %v51
  %v58 = vpack.c.bf16 %v54, %v53
  %v59 = vld [vmem:[%s3] sm:$0x3]
  %vm60 = vcmask 31744
  %v62 = vsel %vm60, %v55, 0
  %v65 = vsel %vm60, %v56, 0
  %v68 = vsel %vm60, %v57, 0
  %v71 = vsel %vm60, %v58, 0
  %vm73 = vcmask 1041408
  %v75 = vsel %vm73, %v59, 0
  %77 = vmatprep.subr.bf16.mxu0 0
  %78 = vmatpush1.bf16.msra.mxu0 0
  %79 = vmatprep.subr.bf16.mxu0 0
  %80 = vmatpush1.bf16.msra.mxu0 0
  %81 = vmatprep.subr.bf16.mxu0 0
  %82 = vmatpush1.bf16.msra.mxu0 0
  %83 = vmatprep.subr.bf16.mxu0 0
  %84 = vmatpush1.bf16.msra.mxu0 0
  %85 = vmatprep.subr.bf16.mxu0 0
  %86 = vmatpush1.bf16.msra.mxu0 0
  %87 = vmatprep.subr.bf16.mxu0 0
  %88 = vmatpush1.bf16.msra.mxu0 0
  %89 = vmatprep.subr.bf16.mxu0 0
  %90 = vmatpush1.bf16.msra.mxu0 0
  %91 = vmatprep.subr.bf16.mxu0 0
  %92 = vmatpush1.bf16.msra.mxu0 %v75
  %93 = vmatprep.subr.bf16.mxu0 0
  %94 = vmatpush2.bf16.msra.mxu0 0
  %95 = vmatprep.subr.bf16.mxu0 0
  %96 = vmatpush2.bf16.msra.mxu0 0
  %97 = vmatprep.subr.bf16.mxu0 0
  %98 = vmatpush2.bf16.msra.mxu0 0
  %99 = vmatprep.subr.bf16.mxu0 0
  %100 = vmatpush2.bf16.msra.mxu0 0
  %101 = vmatprep.subr.bf16.mxu0 0
  %102 = vmatpush2.bf16.msra.mxu0 0
  %103 = vmatprep.subr.bf16.mxu0 0
  %104 = vmatpush2.bf16.msra.mxu0 0
  %105 = vmatprep.subr.bf16.mxu0 0
  %106 = vmatpush2.bf16.msra.mxu0 0
  %107 = vmatprep.subr.bf16.mxu0 0
  %108 = vmatpush2.bf16.msra.mxu0 0
  %109 = vmatprep.mubr.bf16.mxu0 0
  %110 = vmatmul.mubr.bf16.gmra.mxu0 %v62
  %v111 = vpop.f32.mrf.mxu0
  %v112 = vadd.f32 0.0, %v111
  %v113 = vpop.f32.mrf.mxu0
  %v114 = vpop.f32.mrf.mxu0
  %v115 = vadd.f32 0.0, %v114
  %v116 = vpop.f32.mrf.mxu0
  %117 = vmatprep.mubr.bf16.mxu0 0
  %118 = vmatmul.mubr.bf16.gmra.mxu0 %v65
  %v119 = vpop.f32.mrf.mxu0
  %v120 = vadd.f32 0.0, %v119
  %v121 = vpop.f32.mrf.mxu0
  %v122 = vpop.f32.mrf.mxu0
  %v123 = vadd.f32 0.0, %v122
  %v124 = vpop.f32.mrf.mxu0
  %125 = vmatprep.mubr.bf16.mxu0 0
  %126 = vmatmul.mubr.bf16.gmra.mxu0 %v68
  %v127 = vpop.f32.mrf.mxu0
  %v128 = vadd.f32 0.0, %v127
  %v129 = vpop.f32.mrf.mxu0
  %v130 = vpop.f32.mrf.mxu0
  %v131 = vadd.f32 0.0, %v130
  %v132 = vpop.f32.mrf.mxu0
  %133 = vmatprep.mubr.bf16.mxu0 0
  %134 = vmatmul.mubr.bf16.gmra.mxu0 %v71
  %v135 = vpop.f32.mrf.mxu0
  %v136 = vadd.f32 0.0, %v135
  %v137 = vpop.f32.mrf.mxu0
  %v138 = vpop.f32.mrf.mxu0
  %v139 = vadd.f32 0.0, %v138
  %v140 = vpop.f32.mrf.mxu0
  %141 = vdwg.mxu0
  %v144 = vunpack.c.l.b16 %v45
  %v145 = vunpack.c.l.b16 %v46
  %v146 = vpack.c.b16 %v145, %v144
  %vm147 = vcmask 97280
  %v149 = vsel %vm147, %v41, 0
  %v152 = vsel %vm147, %v42, 0
  %v155 = vsel %vm147, %v43, 0
  %v158 = vsel %vm147, %v44, 0
  %vm160 = vcmask 1045504
  %v162 = vsel %vm160, %v146, 0
  %164 = vmatprep.subr.bf16.mxu0 0
  %165 = vmatpush1.bf16.msra.mxu0 0
  %166 = vmatprep.subr.bf16.mxu0 0
  %167 = vmatpush1.bf16.msra.mxu0 0
  %168 = vmatprep.subr.bf16.mxu0 0
  %169 = vmatpush1.bf16.msra.mxu0 0
  %170 = vmatprep.subr.bf16.mxu0 0
  %171 = vmatpush1.bf16.msra.mxu0 0
  %172 = vmatprep.subr.bf16.mxu0 0
  %173 = vmatpush1.bf16.msra.mxu0 0
  %174 = vmatprep.subr.bf16.mxu0 0
  %175 = vmatpush1.bf16.msra.mxu0 0
  %176 = vmatprep.subr.bf16.mxu0 0
  %177 = vmatpush1.bf16.msra.mxu0 0
  %178 = vmatprep.subr.bf16.mxu0 0
  %179 = vmatpush1.bf16.msra.mxu0 %v162
  %180 = vmatprep.subr.bf16.mxu0 0
  %181 = vmatpush2.bf16.msra.mxu0 0
  %182 = vmatprep.subr.bf16.mxu0 0
  %183 = vmatpush2.bf16.msra.mxu0 0
  %184 = vmatprep.subr.bf16.mxu0 0
  %185 = vmatpush2.bf16.msra.mxu0 0
  %186 = vmatprep.subr.bf16.mxu0 0
  %187 = vmatpush2.bf16.msra.mxu0 0
  %188 = vmatprep.subr.bf16.mxu0 0
  %189 = vmatpush2.bf16.msra.mxu0 0
  %190 = vmatprep.subr.bf16.mxu0 0
  %191 = vmatpush2.bf16.msra.mxu0 0
  %192 = vmatprep.subr.bf16.mxu0 0
  %193 = vmatpush2.bf16.msra.mxu0 0
  %194 = vmatprep.subr.bf16.mxu0 0
  %195 = vmatpush2.bf16.msra.mxu0 0
  %196 = vmatprep.mubr.bf16.mxu0 0
  %197 = vmatmul.mubr.bf16.gmra.mxu0 %v149
  %v198 = vpop.f32.mrf.mxu0
  %v199 = vadd.f32 %v112, %v198
  %v200 = vpop.f32.mrf.mxu0
  %v201 = vpop.f32.mrf.mxu0
  %v202 = vadd.f32 %v115, %v201
  %v203 = vpop.f32.mrf.mxu0
  %204 = vmatprep.mubr.bf16.mxu0 0
  %205 = vmatmul.mubr.bf16.gmra.mxu0 %v152
  %v206 = vpop.f32.mrf.mxu0
  %v207 = vadd.f32 %v120, %v206
  %v208 = vpop.f32.mrf.mxu0
  %v209 = vpop.f32.mrf.mxu0
  %v210 = vadd.f32 %v123, %v209
  %v211 = vpop.f32.mrf.mxu0
  %212 = vmatprep.mubr.bf16.mxu0 0
  %213 = vmatmul.mubr.bf16.gmra.mxu0 %v155
  %v214 = vpop.f32.mrf.mxu0
  %v215 = vadd.f32 %v128, %v214
  %v216 = vpop.f32.mrf.mxu0
  %v217 = vpop.f32.mrf.mxu0
  %v218 = vadd.f32 %v131, %v217
  %v219 = vpop.f32.mrf.mxu0
  %220 = vmatprep.mubr.bf16.mxu0 0
  %221 = vmatmul.mubr.bf16.gmra.mxu0 %v158
  %v222 = vpop.f32.mrf.mxu0
  %v223 = vadd.f32 %v136, %v222
  %v224 = vpop.f32.mrf.mxu0
  %v225 = vpop.f32.mrf.mxu0
  %v226 = vadd.f32 %v139, %v225
  %v227 = vpop.f32.mrf.mxu0
  %228 = vdwg.mxu0
  %v229 = vld [vmem:[%s4] sm:$0x1]
  %v231 = vlaneseq
  %v232 = vshrl.u32 %v231, 7
  %v233 = vsub.s32 0, %v232
  %v234 = vrot.slane %v229, %v233
  %v236 = vadd.f32 %v199, %v234
  %v237 = vadd.f32 %v202, %v234
  %v238 = vadd.f32 %v207, %v234
  %v239 = vadd.f32 %v210, %v234
  %v240 = vadd.f32 %v215, %v234
  %v241 = vadd.f32 %v218, %v234
  %v242 = vadd.f32 %v223, %v234
  %v243 = vadd.f32 %v226, %v234
  %v244 = vmax.f32 %v236, 0.0
  %v245 = vmax.f32 %v237, 0.0
  %v246 = vmax.f32 %v238, 0.0
  %v247 = vmax.f32 %v239, 0.0
  %v248 = vmax.f32 %v240, 0.0
  %v249 = vmax.f32 %v241, 0.0
  %v250 = vmax.f32 %v242, 0.0
  %v251 = vmax.f32 %v243, 0.0
  %v252 = vpack.c.bf16 %v245, %v244
  %v253 = vpack.c.bf16 %v247, %v246
  %v254 = vpack.c.bf16 %v249, %v248
  %v255 = vpack.c.bf16 %v251, %v250
  %v256 = vld [vmem:[%s5] sm:$0xf]
  %v257 = vld [vmem:[%s5 + $0x4] sm:$0xf]
  %v258 = vld [vmem:[%s5 + $0x8] sm:$0xf]
  %v259 = vld [vmem:[%s5 + $0xc] sm:$0xf]
  %v260 = vld [vmem:[%s5 + $0x10] sm:$0xf]
  %v261 = vld [vmem:[%s5 + $0x14] sm:$0xf]
  %v262 = vld [vmem:[%s5 + $0x18] sm:$0xf]
  %v263 = vld [vmem:[%s5 + $0x1c] sm:$0xf]
  %v264 = vld [vmem:[%s6] sm:$0x1]
  %v266 = vlaneseq
  %v267 = vshrl.u32 %v266, 7
  %v268 = vsub.s32 0, %v267
  %v269 = vrot.slane %v264, %v268
  %v279 = vunpack.c.l.b16 %v256
  %v280 = vunpack.c.l.b16 %v257
  %v281 = vunpack.c.l.b16 %v258
  %v282 = vunpack.c.l.b16 %v259
  %v283 = vunpack.c.l.b16 %v260
  %v284 = vunpack.c.l.b16 %v261
  %v285 = vunpack.c.l.b16 %v262
  %v286 = vunpack.c.l.b16 %v263
  %v287 = vpack.c.b16 %v280, %v279
  %v288 = vpack.c.b16 %v282, %v281
  %v289 = vpack.c.b16 %v284, %v283
  %v290 = vpack.c.b16 %v286, %v285
  %vm295 = vcmask 523264
  %v297 = vsel %vm295, %v252, 0
  %v300 = vsel %vm295, %v253, 0
  %v303 = vsel %vm295, %v254, 0
  %v306 = vsel %vm295, %v255, 0
  %308 = vmatprep.subr.bf16.mxu0 0
  %309 = vmatpush1.bf16.msra.mxu0 0
  %310 = vmatprep.subr.bf16.mxu0 0
  %311 = vmatpush1.bf16.msra.mxu0 0
  %312 = vmatprep.subr.bf16.mxu0 0
  %313 = vmatpush1.bf16.msra.mxu0 0
  %314 = vmatprep.subr.bf16.mxu0 0
  %315 = vmatpush1.bf16.msra.mxu0 0
  %316 = vmatprep.subr.bf16.mxu0 0
  %317 = vmatpush1.bf16.msra.mxu0 %v290
  %318 = vmatprep.subr.bf16.mxu0 0
  %319 = vmatpush1.bf16.msra.mxu0 %v289
  %320 = vmatprep.subr.bf16.mxu0 0
  %321 = vmatpush1.bf16.msra.mxu0 %v288
  %322 = vmatprep.subr.bf16.mxu0 0
  %323 = vmatpush1.bf16.msra.mxu0 %v287
  %324 = vmatprep.subr.bf16.mxu0 0
  %325 = vmatpush2.bf16.msra.mxu0 0
  %326 = vmatprep.subr.bf16.mxu0 0
  %327 = vmatpush2.bf16.msra.mxu0 0
  %328 = vmatprep.subr.bf16.mxu0 0
  %329 = vmatpush2.bf16.msra.mxu0 0
  %330 = vmatprep.subr.bf16.mxu0 0
  %331 = vmatpush2.bf16.msra.mxu0 0
  %332 = vmatprep.subr.bf16.mxu0 0
  %333 = vmatpush2.bf16.msra.mxu0 0
  %334 = vmatprep.subr.bf16.mxu0 0
  %335 = vmatpush2.bf16.msra.mxu0 0
  %336 = vmatprep.subr.bf16.mxu0 0
  %337 = vmatpush2.bf16.msra.mxu0 0
  %338 = vmatprep.subr.bf16.mxu0 0
  %339 = vmatpush2.bf16.msra.mxu0 0
  %340 = vmatprep.mubr.bf16.mxu0 0
  %341 = vmatmul.mubr.bf16.gmra.mxu0 %v297
  %v342 = vpop.f32.mrf.mxu0
  %v343 = vadd.f32 %v269, %v342
  %v344 = vpop.f32.mrf.mxu0
  %v345 = vpop.f32.mrf.mxu0
  %v346 = vadd.f32 %v269, %v345
  %v347 = vpop.f32.mrf.mxu0
  %348 = vmatprep.mubr.bf16.mxu0 0
  %349 = vmatmul.mubr.bf16.gmra.mxu0 %v300
  %v350 = vpop.f32.mrf.mxu0
  %v351 = vadd.f32 %v269, %v350
  %v352 = vpop.f32.mrf.mxu0
  %v353 = vpop.f32.mrf.mxu0
  %v354 = vadd.f32 %v269, %v353
  %v355 = vpop.f32.mrf.mxu0
  %356 = vmatprep.mubr.bf16.mxu0 0
  %357 = vmatmul.mubr.bf16.gmra.mxu0 %v303
  %v358 = vpop.f32.mrf.mxu0
  %v359 = vadd.f32 %v269, %v358
  %v360 = vpop.f32.mrf.mxu0
  %v361 = vpop.f32.mrf.mxu0
  %v362 = vadd.f32 %v269, %v361
  %v363 = vpop.f32.mrf.mxu0
  %364 = vmatprep.mubr.bf16.mxu0 0
  %365 = vmatmul.mubr.bf16.gmra.mxu0 %v306
  %v366 = vpop.f32.mrf.mxu0
  %v367 = vadd.f32 %v269, %v366
  %v368 = vpop.f32.mrf.mxu0
  %v369 = vpop.f32.mrf.mxu0
  %v370 = vadd.f32 %v269, %v369
  %v371 = vpop.f32.mrf.mxu0
  %372 = vdwg.mxu0
  %v373 = vmax.f32 %v343, 0.0
  %v374 = vmax.f32 %v346, 0.0
  %v375 = vmax.f32 %v351, 0.0
  %v376 = vmax.f32 %v354, 0.0
  %v377 = vmax.f32 %v359, 0.0
  %v378 = vmax.f32 %v362, 0.0
  %v379 = vmax.f32 %v367, 0.0
  %v380 = vmax.f32 %v370, 0.0
  %v381 = vpack.c.bf16 %v374, %v373
  %v382 = vpack.c.bf16 %v376, %v375
  %v383 = vpack.c.bf16 %v378, %v377
  %v384 = vpack.c.bf16 %v380, %v379
  %v385 = vld [vmem:[%s7] sm:$0x1]
  %v386 = vld [vmem:[%s8] sm:$0x3]
  %388 = vset.pattern.permute.xlu0 0
  %389 = vperm.xlu0 %388, %v386
  %v390 = vpop.permute.xlu0 %389
  %v393 = vsel %vm295, %v385, 0
  %v396 = vsel %vm295, %v381, 0
  %v399 = vsel %vm295, %v382, 0
  %v402 = vsel %vm295, %v383, 0
  %v405 = vsel %vm295, %v384, 0
  %407 = vmatprep.subr.bf16.mxu0 0
  %408 = vmatpush1.bf16.xpose.msra.mxu0 0
  %409 = vmatprep.subr.bf16.mxu0 0
  %410 = vmatpush1.bf16.xpose.msra.mxu0 0
  %411 = vmatprep.subr.bf16.mxu0 0
  %412 = vmatpush1.bf16.xpose.msra.mxu0 0
  %413 = vmatprep.subr.bf16.mxu0 0
  %414 = vmatpush1.bf16.xpose.msra.mxu0 0
  %415 = vmatprep.subr.bf16.mxu0 0
  %416 = vmatpush1.bf16.xpose.msra.mxu0 %v405
  %417 = vmatprep.subr.bf16.mxu0 0
  %418 = vmatpush1.bf16.xpose.msra.mxu0 %v402
  %419 = vmatprep.subr.bf16.mxu0 0
  %420 = vmatpush1.bf16.xpose.msra.mxu0 %v399
  %421 = vmatprep.subr.bf16.mxu0 0
  %422 = vmatpush1.bf16.xpose.msra.mxu0 %v396
  %423 = vmatprep.subr.bf16.mxu0 0
  %424 = vmatpush2.bf16.xpose.msra.mxu0 0
  %425 = vmatprep.subr.bf16.mxu0 0
  %426 = vmatpush2.bf16.xpose.msra.mxu0 0
  %427 = vmatprep.subr.bf16.mxu0 0
  %428 = vmatpush2.bf16.xpose.msra.mxu0 0
  %429 = vmatprep.subr.bf16.mxu0 0
  %430 = vmatpush2.bf16.xpose.msra.mxu0 0
  %431 = vmatprep.subr.bf16.mxu0 0
  %432 = vmatpush2.bf16.xpose.msra.mxu0 0
  %433 = vmatprep.subr.bf16.mxu0 0
  %434 = vmatpush2.bf16.xpose.msra.mxu0 0
  %435 = vmatprep.subr.bf16.mxu0 0
  %436 = vmatpush2.bf16.xpose.msra.mxu0 0
  %437 = vmatprep.subr.bf16.mxu0 0
  %438 = vmatpush2.bf16.xpose.msra.mxu0 0
  %439 = vmatprep.mubr.bf16.mxu0 0
  %440 = vmatmul.mubr.bf16.gmra.mxu0 %v393
  %v441 = vpop.f32.mrf.mxu0
  %v442 = vadd.f32 %v390, %v441
  %v443 = vpop.f32.mrf.mxu0
  %v444 = vpop.f32.mrf.mxu0
  %v445 = vpop.f32.mrf.mxu0
  %446 = vdwg.mxu0
  %vm447 = vcmask 517120
  %448 = vst.msk [vmem:[%s9] sm:$0x3] %vm447, %v442
  // Predicated region
  $region38: #{critic_forward.1} parent=0 // pred_check
    _
  $region39: #{critic_forward.1} parent=0 // pred_check_branch
    %450 = sbr.rel (0) target = $region41
  $region40: #{critic_forward.1} parent=0 // pred_region
    _
  $region41: #{critic_forward.1} parent=0 // pred_fallthru
    _
  // Predicated region
  $region42: #{critic_forward.1} parent=0 // pred_check
    _
  $region43: #{critic_forward.1} parent=0 // pred_check_branch
    %452 = sbr.rel (0) target = $region45
  $region44: #{critic_forward.1} parent=0 // pred_region
    _
  $region45: #{critic_forward.1} parent=0 // pred_fallthru
    _

</llo_original>
